<compile_context>
chip_gen: v6e
topology: v6e:2x2x1
jax: 0.10.0
libtpu: 0.0.40
codegen_flags: <defaults>
</compile_context>

<pallas_src>
import functools

import jax
import jax.numpy as jnp
from jax import lax
from jax.experimental import pallas as pl
from jax.experimental.pallas import tpu as pltpu


def _pick_hw_tile(hw, max_tile=2048):
    """Largest divisor of HW that is a multiple of 128 and <= max_tile."""
    if hw <= max_tile:
        return hw
    start = max_tile - (max_tile % 128)
    for t in range(start, 127, -128):
        if hw % t == 0:
            return t
    return hw  # TODO(synk): ragged HW tiling if HW has no 128-multiple divisor


# ----------------------------------------------------------------------------
# Fused kernel: point head (1x1 conv) + sigmoid-BCE loss reduction
# ----------------------------------------------------------------------------
def fused_point_loss_kernel(flat_ref, gt_ref, valid_ref,   # scalar prefetch (SMEM)
                            x_ref, ctx_ref, w1t_ref,       # VMEM inputs
                            loss_ref,                       # SMEM output (1,1)
                            *, tile_hw, num_gt, only_neg):
    n = pl.program_id(0)   # image index
    t = pl.program_id(1)   # HW tile index

    @pl.when(jnp.logical_and(n == 0, t == 0))
    def _init():
        loss_ref[0, 0] = jnp.float32(0.0)

    x = x_ref[0]                        # (Cin, T)   -- HW tile lane-dense
    w1t = w1t_ref[...]                  # (K, Cin)
    ctx = ctx_ref[0]                    # (K, 1)     -- precomputed imgC @ w2 + b
    z = jnp.dot(w1t, x, preferred_element_type=jnp.float32) + ctx   # (K, T)

    # Negative (target == 0) part of numerically-stable BCE-with-logits.
    bce = jnp.maximum(z, 0.0) + jnp.log1p(jnp.exp(-jnp.abs(z)))

    if not only_neg:
        K, T = z.shape
        row_k = lax.broadcasted_iota(jnp.int32, (K, T), 0)   # hoisted once
        col_p = lax.broadcasted_iota(jnp.int32, (K, T), 1)
        base = t * tile_hw
        tgt = jnp.zeros((K, T), jnp.float32)
        for m in range(num_gt):          # num_gt is small & static (unrolled)
            fp = flat_ref[n, m] - base   # local column within this HW tile
            k = gt_ref[n, m]
            v = valid_ref[n, m]
            hit = jnp.logical_and(row_k == k, col_p == fp)   # auto-masks off-tile
            tgt = jnp.maximum(tgt, jnp.where(hit, v, jnp.float32(0.0)))
        bce = bce - z * tgt              # adds the -z*t term of BCE

    loss_ref[0, 0] += jnp.sum(bce)


def fused_point_loss(x_chw, ctx, w1t, flat_pos, gt_idx, valid, *, only_neg):
    N, Cin, HW = x_chw.shape
    K = w1t.shape[0]
    M = flat_pos.shape[1]
    tile_hw = _pick_hw_tile(HW)
    n_tiles = HW // tile_hw

    kernel = functools.partial(fused_point_loss_kernel,
                               tile_hw=tile_hw, num_gt=M, only_neg=only_neg)

    cost = pl.CostEstimate(
        flops=int(2 * N * Cin * HW * K + 8 * N * HW * K),
        transcendentals=int(2 * N * HW * K),
        bytes_accessed=int(4 * (N * Cin * HW + N * K + K * Cin + 3 * N * M + 1)),
    )

    loss = pl.pallas_call(
        kernel,
        out_shape=jax.ShapeDtypeStruct((1, 1), jnp.float32),
        grid_spec=pltpu.PrefetchScalarGridSpec(
            num_scalar_prefetch=3,
            grid=(N, n_tiles),
            in_specs=[
                pl.BlockSpec((1, Cin, tile_hw), lambda n, t, *_: (n, 0, t)),
                pl.BlockSpec((1, K, 1), lambda n, t, *_: (n, 0, 0)),
                pl.BlockSpec((K, Cin), lambda n, t, *_: (0, 0)),
            ],
            out_specs=pl.BlockSpec((1, 1), lambda n, t, *_: (0, 0),
                                   memory_space=pltpu.MemorySpace.SMEM),
        ),
        compiler_params=pltpu.CompilerParams(
            dimension_semantics=("arbitrary", "arbitrary")),
        cost_estimate=cost,
    )(flat_pos, gt_idx, valid, x_chw, ctx, w1t)
    return loss[0, 0]


# ----------------------------------------------------------------------------
# Network_point equivalent
# ----------------------------------------------------------------------------
class NetworkPointPallas:
    def __init__(self, params):
        # Store the 1x1-conv weight pre-transposed so the kernel computes
        # logits as (K, HW_tile) -- lane-dense on the long HW axis.
        self.w1t = jnp.asarray(params["w1"], jnp.float32).T   # (K, Cin)
        self.w2 = jnp.asarray(params["w2"], jnp.float32)      # (Cimg, K)
        self.b = jnp.asarray(params["b"], jnp.float32)        # (1, K)

    def __call__(self, encoded_feature, imgC, xs, ys, valid_position, gt_idx,
                 onlyNeg=False):
        N, Cin, H, W = encoded_feature.shape
        K = self.w1t.shape[0]

        # NCHW -> (N, Cin, H*W): pure reshape, no transpose / data movement.
        x_chw = encoded_feature.reshape(N, Cin, H * W).astype(jnp.float32)
        # Hoisted tiny context matmul (one (N,Cimg)x(Cimg,K) outside the kernel).
        ctx = (imgC @ self.w2 + self.b).astype(jnp.float32).reshape(N, K, 1)

        flat_pos = (ys * W + xs).astype(jnp.int32)             # (N, M)
        gt = gt_idx.astype(jnp.int32)                          # (N, M)
        valid = valid_position.astype(jnp.float32)             # (N, M)

        bce_sum = fused_point_loss(x_chw, ctx, self.w1t, flat_pos, gt, valid,
                                   only_neg=bool(onlyNeg))
        pos_num = jnp.sum(valid)                               # Pos_boxes_num
        loss_point = bce_sum / jnp.maximum(pos_num, 1.0)
        return loss_point, pos_num


# ----------------------------------------------------------------------------
# Pure-JAX reference (same semantics as the original dense-target version)
# ----------------------------------------------------------------------------
def reference(encoded_feature, imgC, xs, ys, valid, gt_idx, params, only_neg):
    N, Cin, H, W = encoded_feature.shape
    K = params["w1"].shape[1]
    x = jnp.transpose(encoded_feature, (0, 2, 3, 1)).reshape(N, H * W, Cin)
    z = x @ params["w1"] + (imgC @ params["w2"] + params["b"])[:, None, :]
    if only_neg:
        tgt = jnp.zeros_like(z)
    else:
        flat = ys * W + xs
        nidx = jnp.broadcast_to(jnp.arange(N)[:, None], xs.shape)
        tgt = jnp.zeros((N, H * W, K), jnp.float32)
        tgt = tgt.at[nidx, flat, gt_idx].max(valid)
    bce = jnp.maximum(z, 0.0) - z * tgt + jnp.log1p(jnp.exp(-jnp.abs(z)))
    pos = jnp.sum(valid)
    return jnp.sum(bce) / jnp.maximum(pos, 1.0), pos


# ----------------------------------------------------------------------------
# main
# ----------------------------------------------------------------------------
if __name__ == "__main__":
    N, Cin, H, W = 2, 32, 16, 16      # encoded feature (NCHW)
    Cimg = 8                          # imgC context vector width
    K = 8                             # number of point channels
    M = 8                             # max GT points per image

    key = jax.random.PRNGKey(0)
    kw1, kw2, kx, kc, kxs, kys, kv, kg = jax.random.split(key, 8)

    params = {
        "w1": jax.random.normal(kw1, (Cin, K), jnp.float32) * 0.05,
        "w2": jax.random.normal(kw2, (Cimg, K), jnp.float32) * 0.05,
        "b": jnp.zeros((1, K), jnp.float32),
    }

    encoded_feature = jax.random.normal(kx, (N, Cin, H, W), jnp.float32)
    imgC = jax.random.normal(kc, (N, Cimg), jnp.float32)
    xs = jax.random.randint(kxs, (N, M), 0, W, jnp.int32)
    ys = jax.random.randint(kys, (N, M), 0, H, jnp.int32)
    valid_position = (jax.random.uniform(kv, (N, M)) > 0.3).astype(jnp.float32)
    gt_idx = jax.random.randint(kg, (N, M), 0, K, jnp.int32)

    model = NetworkPointPallas(params)

    loss_point, pos_num = model(encoded_feature, imgC, xs, ys,
                                valid_position, gt_idx, onlyNeg=False)
    loss_neg, pos_num_neg = model(encoded_feature, imgC, xs, ys,
                                  valid_position, gt_idx, onlyNeg=True)
    jax.block_until_ready((loss_point, pos_num, loss_neg, pos_num_neg))

    # Correctness check against the pure-JAX reference.
    ref_loss, ref_pos = reference(encoded_feature, imgC, xs, ys,
                                  valid_position, gt_idx, params, False)
    ref_loss_neg, _ = reference(encoded_feature, imgC, xs, ys,
                                valid_position, gt_idx, params, True)
    assert bool(jnp.allclose(loss_point, ref_loss, rtol=1e-2, atol=1e-2)), \
        (float(loss_point), float(ref_loss))
    assert bool(jnp.allclose(loss_neg, ref_loss_neg, rtol=1e-2, atol=1e-2)), \
        (float(loss_neg), float(ref_loss_neg))
    assert bool(jnp.allclose(pos_num, ref_pos))

    print("KERNEL_OK")
</pallas_src>

<mosaic_0001>
module attributes {stable_mosaic.version = 11 : i64} {
  func.func @fused_point_loss_kernel(%arg0: i32, %arg1: i32, %arg2: memref<2x8xi32, #tpu.memory_space<smem>>, %arg3: memref<2x8xi32, #tpu.memory_space<smem>>, %arg4: memref<2x8xf32, #tpu.memory_space<smem>>, %arg5: memref<1x32x256xf32, #tpu.memory_space<vmem>>, %arg6: memref<1x8x1xf32, #tpu.memory_space<vmem>>, %arg7: memref<8x32xf32, #tpu.memory_space<vmem>>, %arg8: memref<1x1xf32, #tpu.memory_space<smem>>) attributes {dimension_semantics = [#tpu.dimension_semantics<arbitrary>, #tpu.dimension_semantics<arbitrary>], iteration_bounds = array<i64: 2, 1>, scalar_prefetch = 3 : i64, scratch_operands = 0 : i64, tpu.core_type = #tpu.core_type<tc>, window_params = [{transform_indices = @transform_0, window_bounds = array<i64: 1, 32, 256>}, {transform_indices = @transform_1, window_bounds = array<i64: 1, 8, 1>}, {pipeline_mode = #tpu.pipeline_mode<synchronous>, transform_indices = @transform_2, window_bounds = array<i64: 8, 32>}, {transform_indices = @transform_3, window_bounds = array<i64: 1, 1>}]} {
    %c0_i32 = arith.constant 0 : i32
    %0 = arith.cmpi eq, %arg0, %c0_i32 : i32
    %c0_i32_0 = arith.constant 0 : i32
    %1 = arith.cmpi eq, %arg1, %c0_i32_0 : i32
    %2 = arith.andi %0, %1 : i1
    %3 = arith.extui %2 : i1 to i32
    %c0_i32_1 = arith.constant 0 : i32
    %4 = arith.cmpi ne, %3, %c0_i32_1 : i32
    scf.if %4 {
      %cst_42 = arith.constant 0.000000e+00 : f32
      %c0_43 = arith.constant 0 : index
      %c0_44 = arith.constant 0 : index
      %162 = memref.load %arg8[%c0_43, %c0_44] : memref<1x1xf32, #tpu.memory_space<smem>>
      memref.store %cst_42, %arg8[%c0_43, %c0_44] : memref<1x1xf32, #tpu.memory_space<smem>>
    } else {
    }
    %c0 = arith.constant 0 : index
    %c0_2 = arith.constant 0 : index
    %c0_3 = arith.constant 0 : index
    %5 = vector.load %arg5[%c0, %c0_2, %c0_3] : memref<1x32x256xf32, #tpu.memory_space<vmem>>, vector<1x32x256xf32>
    %6 = vector.shape_cast %5 : vector<1x32x256xf32> to vector<32x256xf32>
    %c0_4 = arith.constant 0 : index
    %c0_5 = arith.constant 0 : index
    %7 = vector.load %arg7[%c0_4, %c0_5] : memref<8x32xf32, #tpu.memory_space<vmem>>, vector<8x32xf32>
    %c0_6 = arith.constant 0 : index
    %c0_7 = arith.constant 0 : index
    %c0_8 = arith.constant 0 : index
    %8 = vector.load %arg6[%c0_6, %c0_7, %c0_8] : memref<1x8x1xf32, #tpu.memory_space<vmem>>, vector<1x8x1xf32>
    %9 = vector.shape_cast %8 : vector<1x8x1xf32> to vector<8x1xf32>
    %cst = arith.constant dense<0.000000e+00> : vector<8x256xf32>
    %10 = tpu.matmul %7, %6, %cst {dimension_numbers = #tpu.dot_dimension_numbers<[1], [0], [0], [1], [0, 0, 1, 1], [], []>} : vector<8x32xf32>, vector<32x256xf32>, vector<8x256xf32> -> vector<8x256xf32>
    %11 = vector.broadcast %9 : vector<8x1xf32> to vector<8x256xf32>
    %12 = arith.addf %10, %11 : vector<8x256xf32>
    %cst_9 = arith.constant 0.000000e+00 : f32
    %13 = vector.broadcast %cst_9 : f32 to vector<8x256xf32>
    %14 = arith.maximumf %12, %13 : vector<8x256xf32>
    %15 = math.absf %12 : vector<8x256xf32>
    %cst_10 = arith.constant 0.000000e+00 : f32
    %16 = vector.broadcast %cst_10 : f32 to vector<8x256xf32>
    %17 = arith.subf %16, %15 : vector<8x256xf32>
    %18 = math.exp %17 : vector<8x256xf32>
    %19 = math.log1p %18 : vector<8x256xf32>
    %20 = arith.addf %14, %19 : vector<8x256xf32>
    %21 = tpu.iota {dimensions = array<i32: 0>} : vector<8x256xi32>
    %22 = tpu.iota {dimensions = array<i32: 1>} : vector<8x256xi32>
    %c256_i32 = arith.constant 256 : i32
    %23 = arith.muli %arg1, %c256_i32 : i32
    %cst_11 = arith.constant 0.000000e+00 : f32
    %24 = vector.broadcast %cst_11 : f32 to vector<8x256xf32>
    %25 = arith.index_cast %arg0 : i32 to index
    %c0_12 = arith.constant 0 : index
    %26 = memref.load %arg2[%25, %c0_12] : memref<2x8xi32, #tpu.memory_space<smem>>
    %27 = arith.subi %26, %23 : i32
    %28 = arith.index_cast %arg0 : i32 to index
    %c0_13 = arith.constant 0 : index
    %29 = memref.load %arg3[%28, %c0_13] : memref<2x8xi32, #tpu.memory_space<smem>>
    %30 = arith.index_cast %arg0 : i32 to index
    %c0_14 = arith.constant 0 : index
    %31 = memref.load %arg4[%30, %c0_14] : memref<2x8xf32, #tpu.memory_space<smem>>
    %32 = vector.broadcast %29 : i32 to vector<8x256xi32>
    %33 = arith.cmpi eq, %21, %32 : vector<8x256xi32>
    %34 = vector.broadcast %27 : i32 to vector<8x256xi32>
    %35 = arith.cmpi eq, %22, %34 : vector<8x256xi32>
    %36 = arith.andi %33, %35 : vector<8x256xi1>
    %cst_15 = arith.constant 0.000000e+00 : f32
    %37 = vector.broadcast %31 : f32 to vector<8x256xf32>
    %38 = vector.broadcast %cst_15 : f32 to vector<8x256xf32>
    %39 = arith.select %36, %37, %38 : vector<8x256xi1>, vector<8x256xf32>
    %40 = arith.maximumf %24, %39 : vector<8x256xf32>
    %41 = arith.index_cast %arg0 : i32 to index
    %c1 = arith.constant 1 : index
    %42 = memref.load %arg2[%41, %c1] : memref<2x8xi32, #tpu.memory_space<smem>>
    %43 = arith.subi %42, %23 : i32
    %44 = arith.index_cast %arg0 : i32 to index
    %c1_16 = arith.constant 1 : index
    %45 = memref.load %arg3[%44, %c1_16] : memref<2x8xi32, #tpu.memory_space<smem>>
    %46 = arith.index_cast %arg0 : i32 to index
    %c1_17 = arith.constant 1 : index
    %47 = memref.load %arg4[%46, %c1_17] : memref<2x8xf32, #tpu.memory_space<smem>>
    %48 = vector.broadcast %45 : i32 to vector<8x256xi32>
    %49 = arith.cmpi eq, %21, %48 : vector<8x256xi32>
    %50 = vector.broadcast %43 : i32 to vector<8x256xi32>
    %51 = arith.cmpi eq, %22, %50 : vector<8x256xi32>
    %52 = arith.andi %49, %51 : vector<8x256xi1>
    %cst_18 = arith.constant 0.000000e+00 : f32
    %53 = vector.broadcast %47 : f32 to vector<8x256xf32>
    %54 = vector.broadcast %cst_18 : f32 to vector<8x256xf32>
    %55 = arith.select %52, %53, %54 : vector<8x256xi1>, vector<8x256xf32>
    %56 = arith.maximumf %40, %55 : vector<8x256xf32>
    %57 = arith.index_cast %arg0 : i32 to index
    %c2 = arith.constant 2 : index
    %58 = memref.load %arg2[%57, %c2] : memref<2x8xi32, #tpu.memory_space<smem>>
    %59 = arith.subi %58, %23 : i32
    %60 = arith.index_cast %arg0 : i32 to index
    %c2_19 = arith.constant 2 : index
    %61 = memref.load %arg3[%60, %c2_19] : memref<2x8xi32, #tpu.memory_space<smem>>
    %62 = arith.index_cast %arg0 : i32 to index
    %c2_20 = arith.constant 2 : index
    %63 = memref.load %arg4[%62, %c2_20] : memref<2x8xf32, #tpu.memory_space<smem>>
    %64 = vector.broadcast %61 : i32 to vector<8x256xi32>
    %65 = arith.cmpi eq, %21, %64 : vector<8x256xi32>
    %66 = vector.broadcast %59 : i32 to vector<8x256xi32>
    %67 = arith.cmpi eq, %22, %66 : vector<8x256xi32>
    %68 = arith.andi %65, %67 : vector<8x256xi1>
    %cst_21 = arith.constant 0.000000e+00 : f32
    %69 = vector.broadcast %63 : f32 to vector<8x256xf32>
    %70 = vector.broadcast %cst_21 : f32 to vector<8x256xf32>
    %71 = arith.select %68, %69, %70 : vector<8x256xi1>, vector<8x256xf32>
    %72 = arith.maximumf %56, %71 : vector<8x256xf32>
    %73 = arith.index_cast %arg0 : i32 to index
    %c3 = arith.constant 3 : index
    %74 = memref.load %arg2[%73, %c3] : memref<2x8xi32, #tpu.memory_space<smem>>
    %75 = arith.subi %74, %23 : i32
    %76 = arith.index_cast %arg0 : i32 to index
    %c3_22 = arith.constant 3 : index
    %77 = memref.load %arg3[%76, %c3_22] : memref<2x8xi32, #tpu.memory_space<smem>>
    %78 = arith.index_cast %arg0 : i32 to index
    %c3_23 = arith.constant 3 : index
    %79 = memref.load %arg4[%78, %c3_23] : memref<2x8xf32, #tpu.memory_space<smem>>
    %80 = vector.broadcast %77 : i32 to vector<8x256xi32>
    %81 = arith.cmpi eq, %21, %80 : vector<8x256xi32>
    %82 = vector.broadcast %75 : i32 to vector<8x256xi32>
    %83 = arith.cmpi eq, %22, %82 : vector<8x256xi32>
    %84 = arith.andi %81, %83 : vector<8x256xi1>
    %cst_24 = arith.constant 0.000000e+00 : f32
    %85 = vector.broadcast %79 : f32 to vector<8x256xf32>
    %86 = vector.broadcast %cst_24 : f32 to vector<8x256xf32>
    %87 = arith.select %84, %85, %86 : vector<8x256xi1>, vector<8x256xf32>
    %88 = arith.maximumf %72, %87 : vector<8x256xf32>
    %89 = arith.index_cast %arg0 : i32 to index
    %c4 = arith.constant 4 : index
    %90 = memref.load %arg2[%89, %c4] : memref<2x8xi32, #tpu.memory_space<smem>>
    %91 = arith.subi %90, %23 : i32
    %92 = arith.index_cast %arg0 : i32 to index
    %c4_25 = arith.constant 4 : index
    %93 = memref.load %arg3[%92, %c4_25] : memref<2x8xi32, #tpu.memory_space<smem>>
    %94 = arith.index_cast %arg0 : i32 to index
    %c4_26 = arith.constant 4 : index
    %95 = memref.load %arg4[%94, %c4_26] : memref<2x8xf32, #tpu.memory_space<smem>>
    %96 = vector.broadcast %93 : i32 to vector<8x256xi32>
    %97 = arith.cmpi eq, %21, %96 : vector<8x256xi32>
    %98 = vector.broadcast %91 : i32 to vector<8x256xi32>
    %99 = arith.cmpi eq, %22, %98 : vector<8x256xi32>
    %100 = arith.andi %97, %99 : vector<8x256xi1>
    %cst_27 = arith.constant 0.000000e+00 : f32
    %101 = vector.broadcast %95 : f32 to vector<8x256xf32>
    %102 = vector.broadcast %cst_27 : f32 to vector<8x256xf32>
    %103 = arith.select %100, %101, %102 : vector<8x256xi1>, vector<8x256xf32>
    %104 = arith.maximumf %88, %103 : vector<8x256xf32>
    %105 = arith.index_cast %arg0 : i32 to index
    %c5 = arith.constant 5 : index
    %106 = memref.load %arg2[%105, %c5] : memref<2x8xi32, #tpu.memory_space<smem>>
    %107 = arith.subi %106, %23 : i32
    %108 = arith.index_cast %arg0 : i32 to index
    %c5_28 = arith.constant 5 : index
    %109 = memref.load %arg3[%108, %c5_28] : memref<2x8xi32, #tpu.memory_space<smem>>
    %110 = arith.index_cast %arg0 : i32 to index
    %c5_29 = arith.constant 5 : index
    %111 = memref.load %arg4[%110, %c5_29] : memref<2x8xf32, #tpu.memory_space<smem>>
    %112 = vector.broadcast %109 : i32 to vector<8x256xi32>
    %113 = arith.cmpi eq, %21, %112 : vector<8x256xi32>
    %114 = vector.broadcast %107 : i32 to vector<8x256xi32>
    %115 = arith.cmpi eq, %22, %114 : vector<8x256xi32>
    %116 = arith.andi %113, %115 : vector<8x256xi1>
    %cst_30 = arith.constant 0.000000e+00 : f32
    %117 = vector.broadcast %111 : f32 to vector<8x256xf32>
    %118 = vector.broadcast %cst_30 : f32 to vector<8x256xf32>
    %119 = arith.select %116, %117, %118 : vector<8x256xi1>, vector<8x256xf32>
    %120 = arith.maximumf %104, %119 : vector<8x256xf32>
    %121 = arith.index_cast %arg0 : i32 to index
    %c6 = arith.constant 6 : index
    %122 = memref.load %arg2[%121, %c6] : memref<2x8xi32, #tpu.memory_space<smem>>
    %123 = arith.subi %122, %23 : i32
    %124 = arith.index_cast %arg0 : i32 to index
    %c6_31 = arith.constant 6 : index
    %125 = memref.load %arg3[%124, %c6_31] : memref<2x8xi32, #tpu.memory_space<smem>>
    %126 = arith.index_cast %arg0 : i32 to index
    %c6_32 = arith.constant 6 : index
    %127 = memref.load %arg4[%126, %c6_32] : memref<2x8xf32, #tpu.memory_space<smem>>
    %128 = vector.broadcast %125 : i32 to vector<8x256xi32>
    %129 = arith.cmpi eq, %21, %128 : vector<8x256xi32>
    %130 = vector.broadcast %123 : i32 to vector<8x256xi32>
    %131 = arith.cmpi eq, %22, %130 : vector<8x256xi32>
    %132 = arith.andi %129, %131 : vector<8x256xi1>
    %cst_33 = arith.constant 0.000000e+00 : f32
    %133 = vector.broadcast %127 : f32 to vector<8x256xf32>
    %134 = vector.broadcast %cst_33 : f32 to vector<8x256xf32>
    %135 = arith.select %132, %133, %134 : vector<8x256xi1>, vector<8x256xf32>
    %136 = arith.maximumf %120, %135 : vector<8x256xf32>
    %137 = arith.index_cast %arg0 : i32 to index
    %c7 = arith.constant 7 : index
    %138 = memref.load %arg2[%137, %c7] : memref<2x8xi32, #tpu.memory_space<smem>>
    %139 = arith.subi %138, %23 : i32
    %140 = arith.index_cast %arg0 : i32 to index
    %c7_34 = arith.constant 7 : index
    %141 = memref.load %arg3[%140, %c7_34] : memref<2x8xi32, #tpu.memory_space<smem>>
    %142 = arith.index_cast %arg0 : i32 to index
    %c7_35 = arith.constant 7 : index
    %143 = memref.load %arg4[%142, %c7_35] : memref<2x8xf32, #tpu.memory_space<smem>>
    %144 = vector.broadcast %141 : i32 to vector<8x256xi32>
    %145 = arith.cmpi eq, %21, %144 : vector<8x256xi32>
    %146 = vector.broadcast %139 : i32 to vector<8x256xi32>
    %147 = arith.cmpi eq, %22, %146 : vector<8x256xi32>
    %148 = arith.andi %145, %147 : vector<8x256xi1>
    %cst_36 = arith.constant 0.000000e+00 : f32
    %149 = vector.broadcast %143 : f32 to vector<8x256xf32>
    %150 = vector.broadcast %cst_36 : f32 to vector<8x256xf32>
    %151 = arith.select %148, %149, %150 : vector<8x256xi1>, vector<8x256xf32>
    %152 = arith.maximumf %136, %151 : vector<8x256xf32>
    %153 = arith.mulf %12, %152 : vector<8x256xf32>
    %154 = arith.subf %20, %153 : vector<8x256xf32>
    %c0_37 = arith.constant 0 : index
    %c0_38 = arith.constant 0 : index
    %155 = memref.load %arg8[%c0_37, %c0_38] : memref<1x1xf32, #tpu.memory_space<smem>>
    %156 = vector.shape_cast %154 : vector<8x256xf32> to vector<1x8x256xf32>
    %cst_39 = arith.constant dense<0.000000e+00> : vector<1xf32>
    %157 = vector.multi_reduction <add>, %156, %cst_39 [1, 2] : vector<1x8x256xf32> to vector<1xf32>
    %158 = vector.shape_cast %157 : vector<1xf32> to vector<1x1x1xf32>
    %159 = vector.extract %158[0, 0, 0] : f32 from vector<1x1x1xf32>
    %160 = arith.addf %155, %159 : f32
    %c0_40 = arith.constant 0 : index
    %c0_41 = arith.constant 0 : index
    %161 = memref.load %arg8[%c0_40, %c0_41] : memref<1x1xf32, #tpu.memory_space<smem>>
    memref.store %160, %arg8[%c0_40, %c0_41] : memref<1x1xf32, #tpu.memory_space<smem>>
    return
  }
  func.func @transform_0(%arg0: i32, %arg1: i32, %arg2: memref<2x8xi32, #tpu.memory_space<smem>>, %arg3: memref<2x8xi32, #tpu.memory_space<smem>>, %arg4: memref<2x8xf32, #tpu.memory_space<smem>>) -> (i32, i32, i32) {
    %c0_i32 = arith.constant 0 : i32
    %c0_i32_0 = arith.constant 0 : i32
    return %arg0, %c0_i32, %arg1 : i32, i32, i32
  }
  func.func @transform_1(%arg0: i32, %arg1: i32, %arg2: memref<2x8xi32, #tpu.memory_space<smem>>, %arg3: memref<2x8xi32, #tpu.memory_space<smem>>, %arg4: memref<2x8xf32, #tpu.memory_space<smem>>) -> (i32, i32, i32) {
    %c0_i32 = arith.constant 0 : i32
    %c0_i32_0 = arith.constant 0 : i32
    %c0_i32_1 = arith.constant 0 : i32
    return %arg0, %c0_i32, %c0_i32_0 : i32, i32, i32
  }
  func.func @transform_2(%arg0: i32, %arg1: i32, %arg2: memref<2x8xi32, #tpu.memory_space<smem>>, %arg3: memref<2x8xi32, #tpu.memory_space<smem>>, %arg4: memref<2x8xf32, #tpu.memory_space<smem>>) -> (i32, i32) {
    %c0_i32 = arith.constant 0 : i32
    %c0_i32_0 = arith.constant 0 : i32
    %c0_i32_1 = arith.constant 0 : i32
    return %c0_i32, %c0_i32_0 : i32, i32
  }
  func.func @transform_3(%arg0: i32, %arg1: i32, %arg2: memref<2x8xi32, #tpu.memory_space<smem>>, %arg3: memref<2x8xi32, #tpu.memory_space<smem>>, %arg4: memref<2x8xf32, #tpu.memory_space<smem>>) -> (i32, i32) {
    %c0_i32 = arith.constant 0 : i32
    %c0_i32_0 = arith.constant 0 : i32
    %c0_i32_1 = arith.constant 0 : i32
    return %c0_i32, %c0_i32_0 : i32, i32
  }
}

</mosaic_0001>

<llo_original>
// kernel: tpu_custom_call.1
$region0: #{tpu_custom_call.1}
  #allocation0 [shape = 'u32[]', space=smem, size = 0x4, offset = 0x4, fixed_abs, tag = 'smem constant byte address 0x4 - core index']
  #allocation1 [shape = 'u32[144,128]{1,0:T(1,128)}', space=vmem, size = 0x12000, scoped, tag = 'internal scratch']
  #allocation2 [shape = 's32[1]{0}', space=sflag, size = 0x4, scoped, tag = 'scoped memory for tpu_custom_call.1']
  #allocation3 [shape = 'u8[1024]{0}', space=smem, size = 0x400, scoped, tag = 'prefetched SMEM operand 0']
  #allocation4 [shape = 'u8[1024]{0}', space=smem, size = 0x400, scoped, tag = 'prefetched SMEM operand 1']
  #allocation5 [shape = 'u8[1024]{0}', space=smem, size = 0x400, scoped, tag = 'prefetched SMEM operand 2']
  %s0 = inlined_call_operand.vmem [shape: s32[2,8], index: 0, kind: input, shape index: {}]
  %s1 = inlined_call_operand.vmem [shape: s32[2,8], index: 1, kind: input, shape index: {}]
  %s2 = inlined_call_operand.vmem [shape: f32[2,8], index: 2, kind: input, shape index: {}]
  %s3 = inlined_call_operand.hbm [shape: f32[2,32,256], index: 3, kind: input, shape index: {}]
  %s4 = inlined_call_operand.vmem [shape: f32[2,8,1], index: 4, kind: input, shape index: {}]
  %s5 = inlined_call_operand.vmem [shape: f32[8,32], index: 5, kind: input, shape index: {}]
  %s6 = inlined_call_operand.hbm [shape: f32[1,1], index: 6, kind: output, shape index: {}]
  %s7 = sld [smem:[#allocation0]]
  $region53: #{tpu_custom_call.1} parent=0
    _
  %s9 = ssub.s32 1, %s7
  %s10 = scalar_select 0, %s9, %s7
  %s11 = sshll.u32 %s0, 4
  %s12 = int_to_ptr.vmem [resolvable:$true] %s11
  %14 = dma.vmem_to_smem %s12, 32, [#allocation3], [#allocation2]
  %s15 = sshll.u32 %s1, 4
  %s16 = int_to_ptr.vmem [resolvable:$true] %s15
  %18 = dma.vmem_to_smem %s16, 32, [#allocation4], [#allocation2]
  %s19 = sshll.u32 %s2, 4
  %s20 = int_to_ptr.vmem [resolvable:$true] %s19
  %22 = dma.vmem_to_smem %s20, 32, [#allocation5], [#allocation2]
  %23 = dma.done [#allocation2], 96
  %24 = sfence
  $region1: #{tpu_custom_call.1} parent=0
    #allocation6 [shape = 'u8[65536]{0}', space=vmem, size = 0x10000, scoped, tag = 'input window, operand 3']
    #allocation7 [shape = 's32[2]{0}', space=sflag, size = 0x8, scoped, tag = 'scoped memory for tpu_custom_call.1']
    #allocation8 [shape = 's32[2]{0}', space=sflag, size = 0x8, scoped, tag = 'scoped memory for tpu_custom_call.1']
    #allocation9 [shape = 'u8[512]{0}', space=smem, size = 0x200, scoped, tag = 'output window, operand 0, single buffered']
    %25 = vsyncpa [#allocation7], 0
    %s26 = scalar_lea.sflag [#allocation7], 1
    %27 = vsyncpa %s26, 0
    %28 = vsyncpa [#allocation8], 0
    loop: start=0, step=1, limit=4
    $region2: #{tpu_custom_call.1} parent=1 // loop_pre_header
      _
    $region3: #{tpu_custom_call.1} parent=1 // loop_header
      %s30 = sphi 0, %s34
      %p31 = scmp.ge.s32.totalorder %s30, 4
      %s37 = sphi 0, %s49
      %s38 = sphi 0, %s45
      %s39 = sphi 0, %s37
      %s40 = sphi 0, %s38
      %s41 = sphi 0, %s39
      %s42 = sphi 0, %s40
      %s54 = sphi 0, %s56
      %s57 = sphi 0, %s54
      %s58 = sphi 0, %s57
      %s74 = sphi 0, %s58
      %s80 = sphi 0, %s82
      %s83 = sphi 0, %s80
      %s84 = sphi 0, %s83
      %s100 = sphi 0, %s84
      %s104 = sphi 0, %s104
      %s106 = sphi 0, %s104
      %s107 = sphi 0, %s106
      %s121 = sphi 0, %s107
      %s125 = sphi 0, %s125
      %s127 = sphi 0, %s125
      %s128 = sphi 0, %s127
      %s142 = sphi 0, %s128
    $region4: #{tpu_custom_call.1} parent=1 // loop_header_branch
      %33 = sbr.rel (%p31) target = $region8
    $region5: #{tpu_custom_call.1} parent=1 // loop_body
      %s35 = ssub.s32 %s30, 1
      %s36 = ssub.s32 %s30, 2
      %s43 = sadd.s32 1, %s38
      %p44 = scmp.ge.s32.totalorder %s43, 1
      %s45 = scalar_select %p44, 0, %s43
      %s46 = sadd.s32 1, %s37
      %s47 = scalar_select %p44, %s46, %s37
      %p48 = scmp.ge.s32.totalorder %s47, 2
      %s49 = scalar_select %p48, 0, %s47
      %s50 = ssub.s32 %s37, %s49
      %s51 = ssub.s32 %s38, %s45
      %s52 = sor.u32 %s50, %s51
      %p53 = scmp.eq.s32.totalorder %s52, 0
      %s55 = sadd.s32 %s54, 1
      %s56 = scalar_select %p53, %s54, %s55
      %p59 = pneg %p53
      %p60 = scmp.eq.s32.totalorder %s30, 1
      %p61 = por %p59, %p60
      %p62 = scmp.ne.s32.totalorder %s54, %s57
      %p63 = scmp.eq.s32.totalorder %s30, 0
      %p64 = por %p62, %p63
      %p65 = scmp.ne.s32.totalorder %s54, %s57
      %p66 = scmp.eq.s32.totalorder %s35, 1
      %p67 = por %p65, %p66
      %p68 = scmp.ne.s32.totalorder %s57, %s58
      %p69 = scmp.eq.s32.totalorder %s35, 0
      %p70 = por %p68, %p69
      %p71 = scmp.ne.s32.totalorder %s57, %s58
      %p72 = scmp.eq.s32.totalorder %s36, 1
      %p73 = por %p71, %p72
      %p75 = scmp.ne.s32.totalorder %s58, %s74
      %p76 = scmp.eq.s32.totalorder %s36, 0
      %p77 = por %p75, %p76
      %s78 = ssub.s32 %s37, %s49
      %p79 = scmp.eq.s32.totalorder %s78, 0
      %s81 = sadd.s32 %s80, 1
      %s82 = scalar_select %p79, %s80, %s81
      %p85 = pneg %p79
      %p86 = scmp.eq.s32.totalorder %s30, 1
      %p87 = por %p85, %p86
      %p88 = scmp.ne.s32.totalorder %s80, %s83
      %p89 = scmp.eq.s32.totalorder %s30, 0
      %p90 = por %p88, %p89
      %p91 = scmp.ne.s32.totalorder %s80, %s83
      %p92 = scmp.eq.s32.totalorder %s35, 1
      %p93 = por %p91, %p92
      %p94 = scmp.ne.s32.totalorder %s83, %s84
      %p95 = scmp.eq.s32.totalorder %s35, 0
      %p96 = por %p94, %p95
      %p97 = scmp.ne.s32.totalorder %s83, %s84
      %p98 = scmp.eq.s32.totalorder %s36, 1
      %p99 = por %p97, %p98
      %p101 = scmp.ne.s32.totalorder %s84, %s100
      %p102 = scmp.eq.s32.totalorder %s36, 0
      %p103 = por %p101, %p102
      %s105 = sadd.s32 %s104, 1
      %p108 = scmp.eq.s32.totalorder %s30, 1
      %p109 = scmp.ne.s32.totalorder %s104, %s106
      %p110 = scmp.eq.s32.totalorder %s30, 0
      %p111 = por %p109, %p110
      %p112 = scmp.ne.s32.totalorder %s104, %s106
      %p113 = scmp.eq.s32.totalorder %s35, 1
      %p114 = por %p112, %p113
      %p115 = scmp.ne.s32.totalorder %s106, %s107
      %p116 = scmp.eq.s32.totalorder %s35, 0
      %p117 = por %p115, %p116
      %p118 = scmp.ne.s32.totalorder %s106, %s107
      %p119 = scmp.eq.s32.totalorder %s36, 1
      %p120 = por %p118, %p119
      %p122 = scmp.ne.s32.totalorder %s107, %s121
      %p123 = scmp.eq.s32.totalorder %s36, 0
      %p124 = por %p122, %p123
      %s126 = sadd.s32 %s125, 1
      %p129 = scmp.eq.s32.totalorder %s30, 1
      %p130 = scmp.ne.s32.totalorder %s125, %s127
      %p131 = scmp.eq.s32.totalorder %s30, 0
      %p132 = por %p130, %p131
      %p133 = scmp.ne.s32.totalorder %s125, %s127
      %p134 = scmp.eq.s32.totalorder %s35, 1
      %p135 = por %p133, %p134
      %p136 = scmp.ne.s32.totalorder %s127, %s128
      %p137 = scmp.eq.s32.totalorder %s35, 0
      %p138 = por %p136, %p137
      %p139 = scmp.ne.s32.totalorder %s127, %s128
      %p140 = scmp.eq.s32.totalorder %s36, 1
      %p141 = por %p139, %p140
      %p143 = scmp.ne.s32.totalorder %s128, %s142
      %p144 = scmp.eq.s32.totalorder %s36, 0
      %p145 = por %p143, %p144
      %p146 = scmp.le.s32.totalorder 1, %s30
      %p147 = scmp.lt.s32.totalorder %s30, 3
      %p148 = pnand %p146, %p147
      %p149 = pneg %p148
      // Predicated region
      $region9: #{tpu_custom_call.1} parent=5 // pred_check
        _
      $region10: #{tpu_custom_call.1} parent=5 // pred_check_branch
        %151 = sbr.rel (%p148) target = $region12
      $region11: #{tpu_custom_call.1} parent=5 // pred_region
        %s152 = ssub.s32 %s30, 1
        // Predicated region
        $region13: #{tpu_custom_call.1} parent=11 // pred_check
          %p153 = pneg %p117
        $region14: #{tpu_custom_call.1} parent=11 // pred_check_branch
          %155 = sbr.rel (%p153) target = $region16
        $region15: #{tpu_custom_call.1} parent=11 // pred_region
          _
        $region16: #{tpu_custom_call.1} parent=11 // pred_fallthru
          _
      $region12: #{tpu_custom_call.1} parent=5 // pred_fallthru
        _
      %p156 = scmp.lt.s32.totalorder %s30, 2
      // Predicated region
      $region17: #{tpu_custom_call.1} parent=5 // pred_check
        %p157 = pneg %p156
      $region18: #{tpu_custom_call.1} parent=5 // pred_check_branch
        %159 = sbr.rel (%p157) target = $region20
      $region19: #{tpu_custom_call.1} parent=5 // pred_region
        // Predicated region
        $region21: #{tpu_custom_call.1} parent=19 // pred_check
          %p160 = pneg %p64
        $region22: #{tpu_custom_call.1} parent=19 // pred_check_branch
          %162 = sbr.rel (%p160) target = $region24
        $region23: #{tpu_custom_call.1} parent=19 // pred_region
          %s163 = sand.u32 %s54, 1
          %s164 = scalar_lea.sflag [#allocation7], %s163
          %s165 = sand.u32 %s54, 1
          %s166 = smul.addr %s165, 64
          %s167 = scalar_lea.vmem [#allocation6], %s166
          %s168 = smul.u32 2, %s38
          %s170 = ssub.s32 1024, 1024
          %171 = vsyncadd %s164, %s170
          %s172 = smul.addr %s37, 8
          %s173 = sadd.s32 %s168, %s172
          %s174 = smul.addr %s173, 128
          %s175 = scalar_lea.hbm %s3, %s174
          %s176 = sshll.u32 %s167, 4
          %s177 = int_to_ptr.vmem [resolvable:$true] %s176
          %182 = dma.hbm_to_vmem [thread:$0]  %s175, 1024, %s177, %s164, 256, 256, 16
        $region24: #{tpu_custom_call.1} parent=19 // pred_fallthru
          _
        // Predicated region
        $region25: #{tpu_custom_call.1} parent=19 // pred_check
          %p183 = pneg %p90
        $region26: #{tpu_custom_call.1} parent=19 // pred_check_branch
          %185 = sbr.rel (%p183) target = $region28
        $region27: #{tpu_custom_call.1} parent=19 // pred_region
          %p186 = scmp.lt.s32.totalorder %s37, 1
          %s187 = scalar_select %p186, %s37, 1
          %s188 = smul.addr %s187, 8
          %s189 = scalar_lea.vmem %s4, %s188
        $region28: #{tpu_custom_call.1} parent=19 // pred_fallthru
          _
      $region20: #{tpu_custom_call.1} parent=5 // pred_fallthru
        _
      %p190 = scmp.le.s32.totalorder 1, %s30
      %p191 = scmp.lt.s32.totalorder %s30, 3
      %p192 = pnand %p190, %p191
      %p193 = pneg %p192
      // Predicated region
      $region29: #{tpu_custom_call.1} parent=5 // pred_check
        _
      $region30: #{tpu_custom_call.1} parent=5 // pred_check_branch
        %195 = sbr.rel (%p192) target = $region32
      $region31: #{tpu_custom_call.1} parent=5 // pred_region
        %s196 = ssub.s32 %s30, 1
        %s197 = sand.u32 %s57, 1
        %s198 = scalar_lea.sflag [#allocation7], %s197
        %s199 = sand.u32 %s57, 1
        %s200 = smul.addr %s199, 64
        %s201 = scalar_lea.vmem [#allocation6], %s200
        // Predicated region
        $region33: #{tpu_custom_call.1} parent=31 // pred_check
          %p202 = pneg %p70
        $region34: #{tpu_custom_call.1} parent=31 // pred_check_branch
          %204 = sbr.rel (%p202) target = $region36
        $region35: #{tpu_custom_call.1} parent=31 // pred_region
          %205 = dma.done %s198, 1024
        $region36: #{tpu_custom_call.1} parent=31 // pred_fallthru
          _
        %s206 = sand.u32 %s57, 1
        %s207 = scalar_lea.sflag [#allocation7], %s206
        %s208 = sand.u32 %s57, 1
        %s209 = smul.addr %s208, 64
        %s210 = scalar_lea.vmem [#allocation6], %s209
        %p211 = pneg %p70
        %p212 = pneg %p67
        %p213 = scmp.lt.s32.totalorder %s39, 1
        %s214 = scalar_select %p213, %s39, 1
        %s215 = smul.addr %s214, 8
        %s216 = scalar_lea.vmem %s4, %s215
        %p217 = pneg %p96
        %p218 = pneg %p93
        %p219 = pneg %p117
        %p220 = pneg %p114
        %p221 = pneg %p138
        %p222 = pneg %p135
        %s223 = smul.u32 2, %s40
        %p224 = scmp.lt.s32.totalorder %s39, 1
        %s225 = scalar_select %p224, %s39, 1
        %s226 = smul.addr %s225, 8
        %s227 = scalar_lea.vmem %s4, %s226
        %p228 = scmp.eq.s32.totalorder %s39, 0
        %p229 = scmp.eq.s32.totalorder %s40, 0
        %p230 = pnand %p228, %p229
        %p231 = pneg %p230
        // Predicated region
        $region37: #{tpu_custom_call.1} parent=31 // pred_check
          _
        $region38: #{tpu_custom_call.1} parent=31 // pred_check_branch
          %233 = sbr.rel (%p230) target = $region40
        $region39: #{tpu_custom_call.1} parent=31 // pred_region
          %s234 = scalar_lea.smem [#allocation9], 0
          %235 = sst [smem:[%s234]] 0.0
        $region40: #{tpu_custom_call.1} parent=31 // pred_fallthru
          _
        %v236 = vld [vmem:[%s201] sm:$0xff]
        %v237 = vld [vmem:[%s201 + $0x8] sm:$0xff]
        %v238 = vld [vmem:[%s201 + $0x10] sm:$0xff]
        %v239 = vld [vmem:[%s201 + $0x18] sm:$0xff]
        %v240 = vld [vmem:[%s201 + $0x20] sm:$0xff]
        %v241 = vld [vmem:[%s201 + $0x28] sm:$0xff]
        %v242 = vld [vmem:[%s201 + $0x30] sm:$0xff]
        %v243 = vld [vmem:[%s201 + $0x38] sm:$0xff]
        %v244 = vld [vmem:[%s5] sm:$0xff]
        %v245 = vld [vmem:[%s227] sm:$0xff]
        %247 = vset.pattern.permute.xlu0 0
        %248 = vperm.xlu0 %247, %v245
        %v249 = vpop.permute.xlu0 %248
        %vm251 = vcmask 261120
        %v253 = vsel %vm251, %v244, 0
        %255 = vmatprep.subr.mxu0 0.0
        %256 = vmatpush1.msra.mxu0 0.0
        %257 = vmatprep.subr.mxu0 0.0
        %258 = vmatpush1.msra.mxu0 0.0
        %259 = vmatprep.subr.mxu0 0.0
        %260 = vmatpush1.msra.mxu0 0.0
        %261 = vmatprep.subr.mxu0 0.0
        %262 = vmatpush1.msra.mxu0 0.0
        %263 = vmatprep.subr.mxu0 0.0
        %264 = vmatpush1.msra.mxu0 0.0
        %265 = vmatprep.subr.mxu0 0.0
        %266 = vmatpush1.msra.mxu0 0.0
        %267 = vmatprep.subr.mxu0 0.0
        %268 = vmatpush1.msra.mxu0 0.0
        %269 = vmatprep.subr.mxu0 0.0
        %270 = vmatpush1.msra.mxu0 0.0
        %271 = vmatprep.subr.mxu0 0.0
        %272 = vmatpush1.msra.mxu0 0.0
        %273 = vmatprep.subr.mxu0 0.0
        %274 = vmatpush1.msra.mxu0 0.0
        %275 = vmatprep.subr.mxu0 0.0
        %276 = vmatpush1.msra.mxu0 0.0
        %277 = vmatprep.subr.mxu0 0.0
        %278 = vmatpush1.msra.mxu0 0.0
        %279 = vmatprep.subr.mxu0 %v243
        %280 = vmatpush1.msra.mxu0 %v242
        %281 = vmatprep.subr.mxu0 %v241
        %282 = vmatpush1.msra.mxu0 %v240
        %283 = vmatprep.subr.mxu0 %v239
        %284 = vmatpush1.msra.mxu0 %v238
        %285 = vmatprep.subr.mxu0 %v237
        %286 = vmatpush1.msra.mxu0 %v236
        %287 = vmatprep.subr.mxu0 0.0
        %288 = vmatpush2.msra.mxu0 0.0
        %289 = vmatprep.subr.mxu0 0.0
        %290 = vmatpush2.msra.mxu0 0.0
        %291 = vmatprep.subr.mxu0 0.0
        %292 = vmatpush2.msra.mxu0 0.0
        %293 = vmatprep.subr.mxu0 0.0
        %294 = vmatpush2.msra.mxu0 0.0
        %295 = vmatprep.subr.mxu0 0.0
        %296 = vmatpush2.msra.mxu0 0.0
        %297 = vmatprep.subr.mxu0 0.0
        %298 = vmatpush2.msra.mxu0 0.0
        %299 = vmatprep.subr.mxu0 0.0
        %300 = vmatpush2.msra.mxu0 0.0
        %301 = vmatprep.subr.mxu0 0.0
        %302 = vmatpush2.msra.mxu0 0.0
        %303 = vmatprep.subr.mxu0 0.0
        %304 = vmatpush2.msra.mxu0 0.0
        %305 = vmatprep.subr.mxu0 0.0
        %306 = vmatpush2.msra.mxu0 0.0
        %307 = vmatprep.subr.mxu0 0.0
        %308 = vmatpush2.msra.mxu0 0.0
        %309 = vmatprep.subr.mxu0 0.0
        %310 = vmatpush2.msra.mxu0 0.0
        %311 = vmatprep.subr.mxu0 0.0
        %312 = vmatpush2.msra.mxu0 0.0
        %313 = vmatprep.subr.mxu0 0.0
        %314 = vmatpush2.msra.mxu0 0.0
        %315 = vmatprep.subr.mxu0 0.0
        %316 = vmatpush2.msra.mxu0 0.0
        %317 = vmatprep.subr.mxu0 0.0
        %318 = vmatpush2.msra.mxu0 0.0
        %319 = vmatprep.mubr.f32.mxu0 0.0
        %320 = vmatmul.mubr.f32.gmra.mxu0 %v253
        %v321 = vpop.f32.mrf.mxu0
        %v322 = vadd.f32 %v249, %v321
        %v323 = vpop.f32.mrf.mxu0
        %v324 = vadd.f32 %v249, %v323
        %325 = vdwg.mxu0
        %v326 = vmax.f32 %v322, 0.0
        %v327 = vmax.f32 %v324, 0.0
        %v328 = vand.u32 2147483647, %v322
        %v329 = vand.u32 2147483647, %v324
        %v330 = vsub.f32 0.0, %v328
        %v331 = vsub.f32 0.0, %v329
        %v332 = vmul.f32 %v330, 1.442695
        %v333 = vpow.pop %v332
        %v334 = vmul.f32 %v331, 1.442695
        %v335 = vpow.pop %v334
        %v336 = vadd.f32 %v333, 1.0
        %v337 = vlog2.pop %v336
        %v338 = vmul.f32 %v337, 0.6931472
        %v339 = vmul.f32 -0.5, %v333
        %v340 = vadd.f32 %v339, 1.0
        %v341 = vmul.f32 %v340, %v333
        %v342 = vand.u32 2147483647, %v333
        %vm343 = vcmp.lt.f32.partialorder %v342, 0.0004427343
        %v344 = vsel %vm343, %v341, %v338
        %v345 = vadd.f32 %v335, 1.0
        %v346 = vlog2.pop %v345
        %v347 = vmul.f32 %v346, 0.6931472
        %v348 = vmul.f32 -0.5, %v335
        %v349 = vadd.f32 %v348, 1.0
        %v350 = vmul.f32 %v349, %v335
        %v351 = vand.u32 2147483647, %v335
        %vm352 = vcmp.lt.f32.partialorder %v351, 0.0004427343
        %v353 = vsel %vm352, %v350, %v347
        %v354 = vadd.f32 %v326, %v344
        %v355 = vadd.f32 %v327, %v353
        %v356 = vlaneseq
        %v357 = vshrl.u32 %v356, 7
        %v358 = vlaneseq
        %v359 = vand.u32 %v358, 127
        %v360 = vadd.s32 %v359, 128
        %s361 = smul.u32 %s40, 256
        %s362 = smul.u32 %s39, 128
        %s363 = sld [smem:[#allocation3 + %s362]]
        %s364 = ssub.s32 %s363, %s361
        %s365 = sld [smem:[#allocation4 + %s362]]
        %s366 = sld [smem:[#allocation5 + %s362]]
        %v367 = vstv %s365
        %vm368 = vcmp.eq.s32.totalorder %v357, %v367
        %v369 = vstv %s364
        %vm370 = vcmp.eq.s32.totalorder %v359, %v369
        %vm371 = vcmp.eq.s32.totalorder %v360, %v369
        %vm372 = vmand %vm368, %vm370
        %vm373 = vmand %vm368, %vm371
        %v374 = vstv %s366
        %v375 = vsel %vm372, %v374, 0.0
        %v376 = vsel %vm373, %v374, 0.0
        %v377 = vmax.f32 %v375, 0.0
        %v378 = vmax.f32 %v376, 0.0
        %s379 = sadd.s32 %s362, 1
        %s380 = sld [smem:[#allocation3 + %s379]]
        %s381 = ssub.s32 %s380, %s361
        %s382 = sld [smem:[#allocation4 + %s379]]
        %s383 = sld [smem:[#allocation5 + %s379]]
        %v384 = vstv %s382
        %vm385 = vcmp.eq.s32.totalorder %v357, %v384
        %v386 = vstv %s381
        %vm387 = vcmp.eq.s32.totalorder %v359, %v386
        %vm388 = vcmp.eq.s32.totalorder %v360, %v386
        %vm389 = vmand %vm385, %vm387
        %vm390 = vmand %vm385, %vm388
        %v391 = vstv %s383
        %v392 = vsel %vm389, %v391, 0.0
        %v393 = vsel %vm390, %v391, 0.0
        %v394 = vmax.f32 %v377, %v392
        %v395 = vmax.f32 %v378, %v393
        %s396 = sadd.s32 %s362, 2
        %s397 = sld [smem:[#allocation3 + %s396]]
        %s398 = ssub.s32 %s397, %s361
        %s399 = sld [smem:[#allocation4 + %s396]]
        %s400 = sld [smem:[#allocation5 + %s396]]
        %v401 = vstv %s399
        %vm402 = vcmp.eq.s32.totalorder %v357, %v401
        %v403 = vstv %s398
        %vm404 = vcmp.eq.s32.totalorder %v359, %v403
        %vm405 = vcmp.eq.s32.totalorder %v360, %v403
        %vm406 = vmand %vm402, %vm404
        %vm407 = vmand %vm402, %vm405
        %v408 = vstv %s400
        %v409 = vsel %vm406, %v408, 0.0
        %v410 = vsel %vm407, %v408, 0.0
        %v411 = vmax.f32 %v394, %v409
        %v412 = vmax.f32 %v395, %v410
        %s413 = sadd.s32 %s362, 3
        %s414 = sld [smem:[#allocation3 + %s413]]
        %s415 = ssub.s32 %s414, %s361
        %s416 = sld [smem:[#allocation4 + %s413]]
        %s417 = sld [smem:[#allocation5 + %s413]]
        %v418 = vstv %s416
        %vm419 = vcmp.eq.s32.totalorder %v357, %v418
        %v420 = vstv %s415
        %vm421 = vcmp.eq.s32.totalorder %v359, %v420
        %vm422 = vcmp.eq.s32.totalorder %v360, %v420
        %vm423 = vmand %vm419, %vm421
        %vm424 = vmand %vm419, %vm422
        %v425 = vstv %s417
        %v426 = vsel %vm423, %v425, 0.0
        %v427 = vsel %vm424, %v425, 0.0
        %v428 = vmax.f32 %v411, %v426
        %v429 = vmax.f32 %v412, %v427
        %s430 = sadd.s32 %s362, 4
        %s431 = sld [smem:[#allocation3 + %s430]]
        %s432 = ssub.s32 %s431, %s361
        %s433 = sld [smem:[#allocation4 + %s430]]
        %s434 = sld [smem:[#allocation5 + %s430]]
        %v435 = vstv %s433
        %vm436 = vcmp.eq.s32.totalorder %v357, %v435
        %v437 = vstv %s432
        %vm438 = vcmp.eq.s32.totalorder %v359, %v437
        %vm439 = vcmp.eq.s32.totalorder %v360, %v437
        %vm440 = vmand %vm436, %vm438
        %vm441 = vmand %vm436, %vm439
        %v442 = vstv %s434
        %v443 = vsel %vm440, %v442, 0.0
        %v444 = vsel %vm441, %v442, 0.0
        %v445 = vmax.f32 %v428, %v443
        %v446 = vmax.f32 %v429, %v444
        %s447 = sadd.s32 %s362, 5
        %s448 = sld [smem:[#allocation3 + %s447]]
        %s449 = ssub.s32 %s448, %s361
        %s450 = sld [smem:[#allocation4 + %s447]]
        %s451 = sld [smem:[#allocation5 + %s447]]
        %v452 = vstv %s450
        %vm453 = vcmp.eq.s32.totalorder %v357, %v452
        %v454 = vstv %s449
        %vm455 = vcmp.eq.s32.totalorder %v359, %v454
        %vm456 = vcmp.eq.s32.totalorder %v360, %v454
        %vm457 = vmand %vm453, %vm455
        %vm458 = vmand %vm453, %vm456
        %v459 = vstv %s451
        %v460 = vsel %vm457, %v459, 0.0
        %v461 = vsel %vm458, %v459, 0.0
        %v462 = vmax.f32 %v445, %v460
        %v463 = vmax.f32 %v446, %v461
        %s464 = sadd.s32 %s362, 6
        %s465 = sld [smem:[#allocation3 + %s464]]
        %s466 = ssub.s32 %s465, %s361
        %s467 = sld [smem:[#allocation4 + %s464]]
        %s468 = sld [smem:[#allocation5 + %s464]]
        %v469 = vstv %s467
        %vm470 = vcmp.eq.s32.totalorder %v357, %v469
        %v471 = vstv %s466
        %vm472 = vcmp.eq.s32.totalorder %v359, %v471
        %vm473 = vcmp.eq.s32.totalorder %v360, %v471
        %vm474 = vmand %vm470, %vm472
        %vm475 = vmand %vm470, %vm473
        %v476 = vstv %s468
        %v477 = vsel %vm474, %v476, 0.0
        %v478 = vsel %vm475, %v476, 0.0
        %v479 = vmax.f32 %v462, %v477
        %v480 = vmax.f32 %v463, %v478
        %s481 = sadd.s32 %s362, 7
        %s482 = sld [smem:[#allocation3 + %s481]]
        %s483 = ssub.s32 %s482, %s361
        %s484 = sld [smem:[#allocation4 + %s481]]
        %s485 = sld [smem:[#allocation5 + %s481]]
        %v486 = vstv %s484
        %vm487 = vcmp.eq.s32.totalorder %v357, %v486
        %v488 = vstv %s483
        %vm489 = vcmp.eq.s32.totalorder %v359, %v488
        %vm490 = vcmp.eq.s32.totalorder %v360, %v488
        %vm491 = vmand %vm487, %vm489
        %vm492 = vmand %vm487, %vm490
        %v493 = vstv %s485
        %v494 = vsel %vm491, %v493, 0.0
        %v495 = vsel %vm492, %v493, 0.0
        %v496 = vmax.f32 %v479, %v494
        %v497 = vmax.f32 %v480, %v495
        %v498 = vmul.f32 %v322, %v496
        %v499 = vmul.f32 %v324, %v497
        %v500 = vsub.f32 %v354, %v498
        %v501 = vsub.f32 %v355, %v499
        %s502 = sld [smem:[#allocation9]]
        %v503 = vadd.f32 %v500, %v501
        %504 = vadd.xlane.f32.xlu0 %v503
        %v505 = vpop.xlane.xlu0 %504
        %v506 = vrot.slane %v505, 4
        %v507 = vadd.f32 %v505, %v506
        %v508 = vrot.slane %v507, 2
        %v509 = vadd.f32 %v507, %v508
        %v510 = vrot.slane %v509, 1
        %v511 = vadd.f32 %v509, %v510
        %s512 = vtos %v511
        %s513 = sadd.f32 %s502, %s512
        %s514 = scalar_lea.smem [#allocation9], 0
        %515 = sst [smem:[%s514]] %s513
        // Predicated region
        $region41: #{tpu_custom_call.1} parent=31 // pred_check
          %p516 = pneg %p135
        $region42: #{tpu_custom_call.1} parent=31 // pred_check_branch
          %518 = sbr.rel (%p516) target = $region44
        $region43: #{tpu_custom_call.1} parent=31 // pred_region
          %s520 = ssub.s32 16, 16
          %521 = vsyncadd [#allocation8], %s520
          %524 = dma.smem_to_hbm [#allocation9], 16, %s6, [#allocation8]
        $region44: #{tpu_custom_call.1} parent=31 // pred_fallthru
          _
        // Predicated region
        $region45: #{tpu_custom_call.1} parent=31 // pred_check
          %p525 = pneg %p135
        $region46: #{tpu_custom_call.1} parent=31 // pred_check_branch
          %527 = sbr.rel (%p525) target = $region48
        $region47: #{tpu_custom_call.1} parent=31 // pred_region
          %528 = dma.done [#allocation8], 16
        $region48: #{tpu_custom_call.1} parent=31 // pred_fallthru
          _
        %529 = sfence
      $region32: #{tpu_custom_call.1} parent=5 // pred_fallthru
        _
      %p530 = scmp.le.s32.totalorder 2, %s30
      // Predicated region
      $region49: #{tpu_custom_call.1} parent=5 // pred_check
        %p531 = pneg %p530
      $region50: #{tpu_custom_call.1} parent=5 // pred_check_branch
        %533 = sbr.rel (%p531) target = $region52
      $region51: #{tpu_custom_call.1} parent=5 // pred_region
        %s534 = ssub.s32 %s30, 2
      $region52: #{tpu_custom_call.1} parent=5 // pred_fallthru
        _
    $region6: #{tpu_custom_call.1} parent=1 // loop_footer
      %s34 = sadd.s32 1, %s30
    $region7: #{tpu_custom_call.1} parent=1 // loop_footer_branch
      %29 = sbr.rel target = $region3
    $region8: #{tpu_custom_call.1} parent=1 // loop_exit
      _
    %535 = vsyncpa [#allocation7], 1
    %s536 = scalar_lea.sflag [#allocation7], 1
    %537 = vsyncpa %s536, 1
    %538 = vsyncpa [#allocation8], 1
    %s539 = scalar_lea.sflag [#allocation8], 1
    %540 = vsyncpa %s539, 1

</llo_original>
